<compile_context>
chip_gen: v6e
topology: v6e:2x2x1
jax: 0.10.0
libtpu: 0.0.40
codegen_flags: <defaults>
</compile_context>

<pallas_src>
import functools

import jax
import jax.numpy as jnp
from jax.experimental import pallas as pl
from jax.experimental.pallas import tpu as pltpu

LANE = 128
SUBLANE = 8


def _round_up(x, m):
    return (x + m - 1) // m * m


def _fused_mlp_kernel(x_ref, *refs, n_layers):
    """Fused multilayer Bayesian-trick forward for one batch tile.

    refs layout: [wm_t, ws2_t, bm, bs2, eps] * n_layers, then the output ref.
    The activation stays in VMEM/vregs for the whole layer stack.
    """
    o_ref = refs[-1]
    layer_refs = refs[:-1]

    x = x_ref[...]
    for li in range(n_layers):
        wm, ws2, bm, bs2, eps = layer_refs[5 * li: 5 * li + 5]
        mean = jnp.dot(x, wm[...], preferred_element_type=jnp.float32) + bm[...]
        var = jnp.dot(x * x, ws2[...], preferred_element_type=jnp.float32) + bs2[...]
        x = mean + jnp.sqrt(var) * eps[...]
        if li < n_layers - 1:           # ReLU follows every Linear except the last
            x = jnp.maximum(x, 0.0)
    o_ref[...] = x


def prepare_params(params):
    """One-time glue: transpose, square and 128-lane-pad the per-layer parameters.

    params: list of (w_mean [out,in], w_std [out,in], b_mean [out], b_std [out]).
    Returns list of (wm_t, ws2_t, bm, bs2, fin, fout) with padded [in_p, out_p] layout.
    """
    prepared = []
    for (wm, ws, bm, bs) in params:
        fout, fin = wm.shape
        fin_p, fout_p = _round_up(fin, LANE), _round_up(fout, LANE)
        wm_t = jnp.zeros((fin_p, fout_p), jnp.float32).at[:fin, :fout].set(
            wm.T.astype(jnp.float32))
        ws2_t = jnp.zeros((fin_p, fout_p), jnp.float32).at[:fin, :fout].set(
            jnp.square(ws.T.astype(jnp.float32)))
        bm_p = jnp.zeros((1, fout_p), jnp.float32).at[:, :fout].set(
            bm.astype(jnp.float32)[None, :])
        bs2_p = jnp.zeros((1, fout_p), jnp.float32).at[:, :fout].set(
            jnp.square(bs.astype(jnp.float32))[None, :])
        prepared.append((wm_t, ws2_t, bm_p, bs2_p, fin, fout))
    return prepared


def forward_pallas(prepared, x, eps_list, *, batch_tile=256):
    """Single fused pallas_call over the whole layer stack, gridded over batch."""
    n_layers = len(prepared)
    B = x.shape[0]
    fin, fin_p = prepared[0][4], prepared[0][0].shape[0]
    fout, fout_p = prepared[-1][5], prepared[-1][0].shape[1]

    tb = min(_round_up(B, SUBLANE), batch_tile)
    b_p = _round_up(B, tb)
    grid = (b_p // tb,)

    x_p = jnp.zeros((b_p, fin_p), jnp.float32).at[:B, :fin].set(x.astype(jnp.float32))

    inputs = [x_p]
    in_specs = [pl.BlockSpec((tb, fin_p), lambda i: (i, 0))]

    for li, (wm_t, ws2_t, bm_p, bs2_p, lfin, lfout) in enumerate(prepared):
        lfin_p, lfout_p = wm_t.shape
        eps_p = jnp.zeros((b_p, lfout_p), jnp.float32).at[:B, :lfout].set(
            eps_list[li].astype(jnp.float32))
        inputs += [wm_t, ws2_t, bm_p, bs2_p, eps_p]
        in_specs += [
            pl.BlockSpec((lfin_p, lfout_p), lambda i: (0, 0)),   # resident weights
            pl.BlockSpec((lfin_p, lfout_p), lambda i: (0, 0)),
            pl.BlockSpec((1, lfout_p), lambda i: (0, 0)),        # resident biases
            pl.BlockSpec((1, lfout_p), lambda i: (0, 0)),
            pl.BlockSpec((tb, lfout_p), lambda i: (i, 0)),       # per-tile noise
        ]

    out_p = pl.pallas_call(
        functools.partial(_fused_mlp_kernel, n_layers=n_layers),
        out_shape=jax.ShapeDtypeStruct((b_p, fout_p), jnp.float32),
        grid=grid,
        in_specs=in_specs,
        out_specs=pl.BlockSpec((tb, fout_p), lambda i: (i, 0)),
        compiler_params=pltpu.CompilerParams(
            dimension_semantics=("parallel",),          # shard batch tiles across TCs
            vmem_limit_bytes=48 * 1024 * 1024,          # fits v7x's 64 MiB with headroom
        ),
    )(*inputs)
    return out_p[:B, :fout]


def init_params(key, in_features, out_features, hidden_features, n_layers):
    """Parameter shapes mirroring MultilayerBayesianTrick.__init__."""
    stds = [1000.0, 3.0, 2.25, 2, 2, 1.9, 1.75, 1.75, 1.7, 1.65]
    sizes = [in_features] + [hidden_features] * n_layers + [out_features]
    params = []
    for li in range(len(sizes) - 1):
        fin, fout = sizes[li], sizes[li + 1]
        key, k1, k2 = jax.random.split(key, 3)
        # Module init uses zero means; use small deterministic random means so the
        # mean-path matmul is actually exercised.
        w_mean = jax.random.normal(k1, (fout, fin), jnp.float32) / jnp.sqrt(fin)
        b_mean = 0.1 * jax.random.normal(k2, (fout,), jnp.float32)
        w_std = jnp.full((fout, fin), stds[n_layers - 1] / fin ** 0.5, jnp.float32)
        b_std = jnp.ones((fout,), jnp.float32)
        params.append((w_mean, w_std, b_mean, b_std))
    return params


def forward_reference(params, x, eps_list):
    """Pure-JAX reference matching the PyTorch forward semantics."""
    n_lin = len(params)
    x = x.astype(jnp.float32)
    for li, (wm, ws, bm, bs) in enumerate(params):
        mean = x @ wm.T + bm
        var = (x ** 2) @ (ws.T ** 2) + bs ** 2
        x = mean + jnp.sqrt(var) * eps_list[li]
        if li < n_lin - 1:
            x = jnp.maximum(x, 0.0)
    return x


if __name__ == "__main__":
    # Small config: seq = [Linear(32,64), ReLU, Linear(64,64), ReLU, Linear(64,8)]
    B, FIN, HID, FOUT, NLAYERS = 16, 32, 64, 8, 2

    root = jax.random.PRNGKey(0)
    k_params, k_x, k_eps = jax.random.split(root, 3)

    params = init_params(k_params, FIN, FOUT, HID, NLAYERS)
    x = jax.random.normal(k_x, (B, FIN), jnp.float32)

    # One shared standard-normal draw per Linear layer (reparameterization noise).
    eps_list = []
    for (wm, _, _, _) in params:
        k_eps, sub = jax.random.split(k_eps)
        eps_list.append(jax.random.normal(sub, (B, wm.shape[0]), jnp.float32))

    prepared = prepare_params(params)           # one-time transpose/square/pad glue
    out = forward_pallas(prepared, x, eps_list)
    out = jax.block_until_ready(out)

    ref = forward_reference(params, x, eps_list)
    assert out.shape == (B, FOUT), out.shape
    assert jnp.allclose(out, ref, atol=1e-4, rtol=1e-4), (
        f"max abs diff {jnp.max(jnp.abs(out - ref))}")

    print("KERNEL_OK")
</pallas_src>

<mosaic_0001>
module attributes {stable_mosaic.version = 11 : i64} {
  func.func @_fused_mlp_kernel(%arg0: i32, %arg1: memref<16x128xf32, #tpu.memory_space<vmem>>, %arg2: memref<128x128xf32, #tpu.memory_space<vmem>>, %arg3: memref<128x128xf32, #tpu.memory_space<vmem>>, %arg4: memref<1x128xf32, #tpu.memory_space<vmem>>, %arg5: memref<1x128xf32, #tpu.memory_space<vmem>>, %arg6: memref<16x128xf32, #tpu.memory_space<vmem>>, %arg7: memref<128x128xf32, #tpu.memory_space<vmem>>, %arg8: memref<128x128xf32, #tpu.memory_space<vmem>>, %arg9: memref<1x128xf32, #tpu.memory_space<vmem>>, %arg10: memref<1x128xf32, #tpu.memory_space<vmem>>, %arg11: memref<16x128xf32, #tpu.memory_space<vmem>>, %arg12: memref<128x128xf32, #tpu.memory_space<vmem>>, %arg13: memref<128x128xf32, #tpu.memory_space<vmem>>, %arg14: memref<1x128xf32, #tpu.memory_space<vmem>>, %arg15: memref<1x128xf32, #tpu.memory_space<vmem>>, %arg16: memref<16x128xf32, #tpu.memory_space<vmem>>, %arg17: memref<16x128xf32, #tpu.memory_space<vmem>>) attributes {dimension_semantics = [#tpu.dimension_semantics<parallel>], iteration_bounds = array<i64: 1>, scalar_prefetch = 0 : i64, scratch_operands = 0 : i64, tpu.core_type = #tpu.core_type<tc>, window_params = [{transform_indices = @transform_0, window_bounds = array<i64: 16, 128>}, {pipeline_mode = #tpu.pipeline_mode<synchronous>, transform_indices = @transform_1, window_bounds = array<i64: 128, 128>}, {pipeline_mode = #tpu.pipeline_mode<synchronous>, transform_indices = @transform_2, window_bounds = array<i64: 128, 128>}, {pipeline_mode = #tpu.pipeline_mode<synchronous>, transform_indices = @transform_3, window_bounds = array<i64: 1, 128>}, {pipeline_mode = #tpu.pipeline_mode<synchronous>, transform_indices = @transform_4, window_bounds = array<i64: 1, 128>}, {transform_indices = @transform_5, window_bounds = array<i64: 16, 128>}, {pipeline_mode = #tpu.pipeline_mode<synchronous>, transform_indices = @transform_6, window_bounds = array<i64: 128, 128>}, {pipeline_mode = #tpu.pipeline_mode<synchronous>, transform_indices = @transform_7, window_bounds = array<i64: 128, 128>}, {pipeline_mode = #tpu.pipeline_mode<synchronous>, transform_indices = @transform_8, window_bounds = array<i64: 1, 128>}, {pipeline_mode = #tpu.pipeline_mode<synchronous>, transform_indices = @transform_9, window_bounds = array<i64: 1, 128>}, {transform_indices = @transform_10, window_bounds = array<i64: 16, 128>}, {pipeline_mode = #tpu.pipeline_mode<synchronous>, transform_indices = @transform_11, window_bounds = array<i64: 128, 128>}, {pipeline_mode = #tpu.pipeline_mode<synchronous>, transform_indices = @transform_12, window_bounds = array<i64: 128, 128>}, {pipeline_mode = #tpu.pipeline_mode<synchronous>, transform_indices = @transform_13, window_bounds = array<i64: 1, 128>}, {pipeline_mode = #tpu.pipeline_mode<synchronous>, transform_indices = @transform_14, window_bounds = array<i64: 1, 128>}, {transform_indices = @transform_15, window_bounds = array<i64: 16, 128>}, {transform_indices = @transform_16, window_bounds = array<i64: 16, 128>}]} {
    %c0 = arith.constant 0 : index
    %c0_0 = arith.constant 0 : index
    %0 = vector.load %arg1[%c0, %c0_0] : memref<16x128xf32, #tpu.memory_space<vmem>>, vector<16x128xf32>
    %c0_1 = arith.constant 0 : index
    %c0_2 = arith.constant 0 : index
    %1 = vector.load %arg2[%c0_1, %c0_2] : memref<128x128xf32, #tpu.memory_space<vmem>>, vector<128x128xf32>
    %cst = arith.constant dense<0.000000e+00> : vector<16x128xf32>
    %2 = tpu.matmul %0, %1, %cst {dimension_numbers = #tpu.dot_dimension_numbers<[1], [0], [0], [1], [0, 0, 1, 1], [], []>} : vector<16x128xf32>, vector<128x128xf32>, vector<16x128xf32> -> vector<16x128xf32>
    %c0_3 = arith.constant 0 : index
    %c0_4 = arith.constant 0 : index
    %3 = vector.load %arg4[%c0_3, %c0_4] : memref<1x128xf32, #tpu.memory_space<vmem>>, vector<1x128xf32>
    %4 = vector.broadcast %3 : vector<1x128xf32> to vector<16x128xf32>
    %5 = arith.addf %2, %4 : vector<16x128xf32>
    %6 = arith.mulf %0, %0 : vector<16x128xf32>
    %c0_5 = arith.constant 0 : index
    %c0_6 = arith.constant 0 : index
    %7 = vector.load %arg3[%c0_5, %c0_6] : memref<128x128xf32, #tpu.memory_space<vmem>>, vector<128x128xf32>
    %cst_7 = arith.constant dense<0.000000e+00> : vector<16x128xf32>
    %8 = tpu.matmul %6, %7, %cst_7 {dimension_numbers = #tpu.dot_dimension_numbers<[1], [0], [0], [1], [0, 0, 1, 1], [], []>} : vector<16x128xf32>, vector<128x128xf32>, vector<16x128xf32> -> vector<16x128xf32>
    %c0_8 = arith.constant 0 : index
    %c0_9 = arith.constant 0 : index
    %9 = vector.load %arg5[%c0_8, %c0_9] : memref<1x128xf32, #tpu.memory_space<vmem>>, vector<1x128xf32>
    %10 = vector.broadcast %9 : vector<1x128xf32> to vector<16x128xf32>
    %11 = arith.addf %8, %10 : vector<16x128xf32>
    %12 = math.sqrt %11 : vector<16x128xf32>
    %c0_10 = arith.constant 0 : index
    %c0_11 = arith.constant 0 : index
    %13 = vector.load %arg6[%c0_10, %c0_11] : memref<16x128xf32, #tpu.memory_space<vmem>>, vector<16x128xf32>
    %14 = arith.mulf %12, %13 : vector<16x128xf32>
    %15 = arith.addf %5, %14 : vector<16x128xf32>
    %cst_12 = arith.constant 0.000000e+00 : f32
    %16 = vector.broadcast %cst_12 : f32 to vector<16x128xf32>
    %17 = arith.maximumf %15, %16 : vector<16x128xf32>
    %c0_13 = arith.constant 0 : index
    %c0_14 = arith.constant 0 : index
    %18 = vector.load %arg7[%c0_13, %c0_14] : memref<128x128xf32, #tpu.memory_space<vmem>>, vector<128x128xf32>
    %cst_15 = arith.constant dense<0.000000e+00> : vector<16x128xf32>
    %19 = tpu.matmul %17, %18, %cst_15 {dimension_numbers = #tpu.dot_dimension_numbers<[1], [0], [0], [1], [0, 0, 1, 1], [], []>} : vector<16x128xf32>, vector<128x128xf32>, vector<16x128xf32> -> vector<16x128xf32>
    %c0_16 = arith.constant 0 : index
    %c0_17 = arith.constant 0 : index
    %20 = vector.load %arg9[%c0_16, %c0_17] : memref<1x128xf32, #tpu.memory_space<vmem>>, vector<1x128xf32>
    %21 = vector.broadcast %20 : vector<1x128xf32> to vector<16x128xf32>
    %22 = arith.addf %19, %21 : vector<16x128xf32>
    %23 = arith.mulf %17, %17 : vector<16x128xf32>
    %c0_18 = arith.constant 0 : index
    %c0_19 = arith.constant 0 : index
    %24 = vector.load %arg8[%c0_18, %c0_19] : memref<128x128xf32, #tpu.memory_space<vmem>>, vector<128x128xf32>
    %cst_20 = arith.constant dense<0.000000e+00> : vector<16x128xf32>
    %25 = tpu.matmul %23, %24, %cst_20 {dimension_numbers = #tpu.dot_dimension_numbers<[1], [0], [0], [1], [0, 0, 1, 1], [], []>} : vector<16x128xf32>, vector<128x128xf32>, vector<16x128xf32> -> vector<16x128xf32>
    %c0_21 = arith.constant 0 : index
    %c0_22 = arith.constant 0 : index
    %26 = vector.load %arg10[%c0_21, %c0_22] : memref<1x128xf32, #tpu.memory_space<vmem>>, vector<1x128xf32>
    %27 = vector.broadcast %26 : vector<1x128xf32> to vector<16x128xf32>
    %28 = arith.addf %25, %27 : vector<16x128xf32>
    %29 = math.sqrt %28 : vector<16x128xf32>
    %c0_23 = arith.constant 0 : index
    %c0_24 = arith.constant 0 : index
    %30 = vector.load %arg11[%c0_23, %c0_24] : memref<16x128xf32, #tpu.memory_space<vmem>>, vector<16x128xf32>
    %31 = arith.mulf %29, %30 : vector<16x128xf32>
    %32 = arith.addf %22, %31 : vector<16x128xf32>
    %cst_25 = arith.constant 0.000000e+00 : f32
    %33 = vector.broadcast %cst_25 : f32 to vector<16x128xf32>
    %34 = arith.maximumf %32, %33 : vector<16x128xf32>
    %c0_26 = arith.constant 0 : index
    %c0_27 = arith.constant 0 : index
    %35 = vector.load %arg12[%c0_26, %c0_27] : memref<128x128xf32, #tpu.memory_space<vmem>>, vector<128x128xf32>
    %cst_28 = arith.constant dense<0.000000e+00> : vector<16x128xf32>
    %36 = tpu.matmul %34, %35, %cst_28 {dimension_numbers = #tpu.dot_dimension_numbers<[1], [0], [0], [1], [0, 0, 1, 1], [], []>} : vector<16x128xf32>, vector<128x128xf32>, vector<16x128xf32> -> vector<16x128xf32>
    %c0_29 = arith.constant 0 : index
    %c0_30 = arith.constant 0 : index
    %37 = vector.load %arg14[%c0_29, %c0_30] : memref<1x128xf32, #tpu.memory_space<vmem>>, vector<1x128xf32>
    %38 = vector.broadcast %37 : vector<1x128xf32> to vector<16x128xf32>
    %39 = arith.addf %36, %38 : vector<16x128xf32>
    %40 = arith.mulf %34, %34 : vector<16x128xf32>
    %c0_31 = arith.constant 0 : index
    %c0_32 = arith.constant 0 : index
    %41 = vector.load %arg13[%c0_31, %c0_32] : memref<128x128xf32, #tpu.memory_space<vmem>>, vector<128x128xf32>
    %cst_33 = arith.constant dense<0.000000e+00> : vector<16x128xf32>
    %42 = tpu.matmul %40, %41, %cst_33 {dimension_numbers = #tpu.dot_dimension_numbers<[1], [0], [0], [1], [0, 0, 1, 1], [], []>} : vector<16x128xf32>, vector<128x128xf32>, vector<16x128xf32> -> vector<16x128xf32>
    %c0_34 = arith.constant 0 : index
    %c0_35 = arith.constant 0 : index
    %43 = vector.load %arg15[%c0_34, %c0_35] : memref<1x128xf32, #tpu.memory_space<vmem>>, vector<1x128xf32>
    %44 = vector.broadcast %43 : vector<1x128xf32> to vector<16x128xf32>
    %45 = arith.addf %42, %44 : vector<16x128xf32>
    %46 = math.sqrt %45 : vector<16x128xf32>
    %c0_36 = arith.constant 0 : index
    %c0_37 = arith.constant 0 : index
    %47 = vector.load %arg16[%c0_36, %c0_37] : memref<16x128xf32, #tpu.memory_space<vmem>>, vector<16x128xf32>
    %48 = arith.mulf %46, %47 : vector<16x128xf32>
    %49 = arith.addf %39, %48 : vector<16x128xf32>
    %c0_38 = arith.constant 0 : index
    %c0_39 = arith.constant 0 : index
    %50 = vector.load %arg17[%c0_38, %c0_39] : memref<16x128xf32, #tpu.memory_space<vmem>>, vector<16x128xf32>
    tpu.vector_store %arg17[%c0_38, %c0_39], %49 {strides = array<i32>} : memref<16x128xf32, #tpu.memory_space<vmem>>, vector<16x128xf32>,
    return
  }
  func.func @transform_0(%arg0: i32) -> (i32, i32) {
    %c0_i32 = arith.constant 0 : i32
    %c0_i32_0 = arith.constant 0 : i32
    return %arg0, %c0_i32 : i32, i32
  }
  func.func @transform_1(%arg0: i32) -> (i32, i32) {
    %c0_i32 = arith.constant 0 : i32
    %c0_i32_0 = arith.constant 0 : i32
    %c0_i32_1 = arith.constant 0 : i32
    return %c0_i32, %c0_i32_0 : i32, i32
  }
  func.func @transform_2(%arg0: i32) -> (i32, i32) {
    %c0_i32 = arith.constant 0 : i32
    %c0_i32_0 = arith.constant 0 : i32
    %c0_i32_1 = arith.constant 0 : i32
    return %c0_i32, %c0_i32_0 : i32, i32
  }
  func.func @transform_3(%arg0: i32) -> (i32, i32) {
    %c0_i32 = arith.constant 0 : i32
    %c0_i32_0 = arith.constant 0 : i32
    %c0_i32_1 = arith.constant 0 : i32
    return %c0_i32, %c0_i32_0 : i32, i32
  }
  func.func @transform_4(%arg0: i32) -> (i32, i32) {
    %c0_i32 = arith.constant 0 : i32
    %c0_i32_0 = arith.constant 0 : i32
    %c0_i32_1 = arith.constant 0 : i32
    return %c0_i32, %c0_i32_0 : i32, i32
  }
  func.func @transform_5(%arg0: i32) -> (i32, i32) {
    %c0_i32 = arith.constant 0 : i32
    %c0_i32_0 = arith.constant 0 : i32
    return %arg0, %c0_i32 : i32, i32
  }
  func.func @transform_6(%arg0: i32) -> (i32, i32) {
    %c0_i32 = arith.constant 0 : i32
    %c0_i32_0 = arith.constant 0 : i32
    %c0_i32_1 = arith.constant 0 : i32
    return %c0_i32, %c0_i32_0 : i32, i32
  }
  func.func @transform_7(%arg0: i32) -> (i32, i32) {
    %c0_i32 = arith.constant 0 : i32
    %c0_i32_0 = arith.constant 0 : i32
    %c0_i32_1 = arith.constant 0 : i32
    return %c0_i32, %c0_i32_0 : i32, i32
  }
  func.func @transform_8(%arg0: i32) -> (i32, i32) {
    %c0_i32 = arith.constant 0 : i32
    %c0_i32_0 = arith.constant 0 : i32
    %c0_i32_1 = arith.constant 0 : i32
    return %c0_i32, %c0_i32_0 : i32, i32
  }
  func.func @transform_9(%arg0: i32) -> (i32, i32) {
    %c0_i32 = arith.constant 0 : i32
    %c0_i32_0 = arith.constant 0 : i32
    %c0_i32_1 = arith.constant 0 : i32
    return %c0_i32, %c0_i32_0 : i32, i32
  }
  func.func @transform_10(%arg0: i32) -> (i32, i32) {
    %c0_i32 = arith.constant 0 : i32
    %c0_i32_0 = arith.constant 0 : i32
    return %arg0, %c0_i32 : i32, i32
  }
  func.func @transform_11(%arg0: i32) -> (i32, i32) {
    %c0_i32 = arith.constant 0 : i32
    %c0_i32_0 = arith.constant 0 : i32
    %c0_i32_1 = arith.constant 0 : i32
    return %c0_i32, %c0_i32_0 : i32, i32
  }
  func.func @transform_12(%arg0: i32) -> (i32, i32) {
    %c0_i32 = arith.constant 0 : i32
    %c0_i32_0 = arith.constant 0 : i32
    %c0_i32_1 = arith.constant 0 : i32
    return %c0_i32, %c0_i32_0 : i32, i32
  }
  func.func @transform_13(%arg0: i32) -> (i32, i32) {
    %c0_i32 = arith.constant 0 : i32
    %c0_i32_0 = arith.constant 0 : i32
    %c0_i32_1 = arith.constant 0 : i32
    return %c0_i32, %c0_i32_0 : i32, i32
  }
  func.func @transform_14(%arg0: i32) -> (i32, i32) {
    %c0_i32 = arith.constant 0 : i32
    %c0_i32_0 = arith.constant 0 : i32
    %c0_i32_1 = arith.constant 0 : i32
    return %c0_i32, %c0_i32_0 : i32, i32
  }
  func.func @transform_15(%arg0: i32) -> (i32, i32) {
    %c0_i32 = arith.constant 0 : i32
    %c0_i32_0 = arith.constant 0 : i32
    return %arg0, %c0_i32 : i32, i32
  }
  func.func @transform_16(%arg0: i32) -> (i32, i32) {
    %c0_i32 = arith.constant 0 : i32
    %c0_i32_0 = arith.constant 0 : i32
    return %arg0, %c0_i32 : i32, i32
  }
}

</mosaic_0001>

<llo_original>
// kernel: tpu_custom_call.1
$region0: #{tpu_custom_call.1}
  #allocation0 [shape = 'u32[]', space=smem, size = 0x4, offset = 0x4, fixed_abs, tag = 'smem constant byte address 0x4 - core index']
  #allocation1 [shape = 'u32[144,128]{1,0:T(1,128)}', space=vmem, size = 0x12000, scoped, tag = 'internal scratch']
  %s0 = inlined_call_operand.hbm [shape: f32[16,128], index: 0, kind: input, shape index: {}]
  %s1 = inlined_call_operand.hbm [shape: f32[128,128], index: 1, kind: input, shape index: {}]
  %s2 = inlined_call_operand.hbm [shape: f32[128,128], index: 2, kind: input, shape index: {}]
  %s3 = inlined_call_operand.vmem [shape: f32[1,128], index: 3, kind: input, shape index: {}]
  %s4 = inlined_call_operand.vmem [shape: f32[1,128], index: 4, kind: input, shape index: {}]
  %s5 = inlined_call_operand.hbm [shape: f32[16,128], index: 5, kind: input, shape index: {}]
  %s6 = inlined_call_operand.hbm [shape: f32[128,128], index: 6, kind: input, shape index: {}]
  %s7 = inlined_call_operand.hbm [shape: f32[128,128], index: 7, kind: input, shape index: {}]
  %s8 = inlined_call_operand.hbm [shape: f32[1,128], index: 8, kind: input, shape index: {}]
  %s9 = inlined_call_operand.hbm [shape: f32[1,128], index: 9, kind: input, shape index: {}]
  %s10 = inlined_call_operand.vmem [shape: f32[16,128], index: 10, kind: input, shape index: {}]
  %s11 = inlined_call_operand.hbm [shape: f32[128,128], index: 11, kind: input, shape index: {}]
  %s12 = inlined_call_operand.hbm [shape: f32[128,128], index: 12, kind: input, shape index: {}]
  %s13 = inlined_call_operand.vmem [shape: f32[1,128], index: 13, kind: input, shape index: {}]
  %s14 = inlined_call_operand.vmem [shape: f32[1,128], index: 14, kind: input, shape index: {}]
  %s15 = inlined_call_operand.hbm [shape: f32[16,128], index: 15, kind: input, shape index: {}]
  %s16 = inlined_call_operand.hbm [shape: f32[16,128], index: 16, kind: output, shape index: {}]
  %s17 = sld [smem:[#allocation0]]
  $region118: #{tpu_custom_call.1} parent=0
    _
  %s19 = ssub.s32 1, %s17
  %s20 = scalar_select 0, %s19, %s17
  $region1: #{tpu_custom_call.1} parent=0
    #allocation2 [shape = 'u8[8192]{0}', space=vmem, size = 0x2000, scoped, tag = 'input window, operand 0, single buffered']
    #allocation3 [shape = 's32[1]{0}', space=sflag, size = 0x4, scoped, tag = 'scoped memory for tpu_custom_call.1']
    #allocation4 [shape = 's32[1]{0}', space=sflag, size = 0x4, scoped, tag = 'scoped memory for tpu_custom_call.1']
    #allocation5 [shape = 'u8[65536]{0}', space=vmem, size = 0x10000, scoped, tag = 'input window, operand 1, single buffered']
    #allocation6 [shape = 's32[1]{0}', space=sflag, size = 0x4, scoped, tag = 'scoped memory for tpu_custom_call.1']
    #allocation7 [shape = 'u8[65536]{0}', space=vmem, size = 0x10000, scoped, tag = 'input window, operand 2, single buffered']
    #allocation8 [shape = 'u8[8192]{0}', space=vmem, size = 0x2000, scoped, tag = 'input window, operand 5, single buffered']
    #allocation9 [shape = 's32[1]{0}', space=sflag, size = 0x4, scoped, tag = 'scoped memory for tpu_custom_call.1']
    #allocation10 [shape = 'u8[65536]{0}', space=vmem, size = 0x10000, scoped, tag = 'input window, operand 6, single buffered']
    #allocation11 [shape = 'u8[65536]{0}', space=vmem, size = 0x10000, scoped, tag = 'input window, operand 7, single buffered']
    #allocation12 [shape = 's32[1]{0}', space=sflag, size = 0x4, scoped, tag = 'scoped memory for tpu_custom_call.1']
    #allocation13 [shape = 'u8[512]{0}', space=vmem, size = 0x400, scoped, tag = 'input window, operand 8, single buffered']
    #allocation14 [shape = 'u8[512]{0}', space=vmem, size = 0x400, scoped, tag = 'input window, operand 9, single buffered']
    #allocation15 [shape = 's32[1]{0}', space=sflag, size = 0x4, scoped, tag = 'scoped memory for tpu_custom_call.1']
    #allocation16 [shape = 'u8[65536]{0}', space=vmem, size = 0x10000, scoped, tag = 'input window, operand 11, single buffered']
    #allocation17 [shape = 'u8[65536]{0}', space=vmem, size = 0x10000, scoped, tag = 'input window, operand 12, single buffered']
    #allocation18 [shape = 's32[1]{0}', space=sflag, size = 0x4, scoped, tag = 'scoped memory for tpu_custom_call.1']
    #allocation19 [shape = 'u8[8192]{0}', space=vmem, size = 0x2000, scoped, tag = 'input window, operand 15, single buffered']
    #allocation20 [shape = 'u8[8192]{0}', space=vmem, size = 0x2000, scoped, tag = 'output window, operand 0, single buffered']
    %21 = vsyncpa [#allocation3], 0
    %22 = vsyncpa [#allocation6], 0
    %23 = vsyncpa [#allocation9], 0
    %24 = vsyncpa [#allocation12], 0
    %25 = vsyncpa [#allocation15], 0
    %26 = vsyncpa [#allocation18], 0
    %27 = vsyncpa [#allocation4], 0
    // Predicated region
    $region2: #{tpu_custom_call.1} parent=1 // pred_check
      _
    $region3: #{tpu_custom_call.1} parent=1 // pred_check_branch
      %29 = sbr.rel (0) target = $region5
    $region4: #{tpu_custom_call.1} parent=1 // pred_region
      %s31 = ssub.s32 256, 256
      %32 = vsyncadd [#allocation3], %s31
      %s33 = sshll.u32 [#allocation2], 4
      %s34 = int_to_ptr.vmem [resolvable:$true] %s33
      %39 = dma.hbm_to_vmem [thread:$0]  %s0, 256, %s34, [#allocation3], 128, 128, 8
    $region5: #{tpu_custom_call.1} parent=1 // pred_fallthru
      _
    // Predicated region
    $region6: #{tpu_custom_call.1} parent=1 // pred_check
      _
    $region7: #{tpu_custom_call.1} parent=1 // pred_check_branch
      %41 = sbr.rel (0) target = $region9
    $region8: #{tpu_custom_call.1} parent=1 // pred_region
      %s43 = ssub.s32 2048, 2048
      %44 = vsyncadd [#allocation6], %s43
      %s45 = sshll.u32 [#allocation5], 4
      %s46 = int_to_ptr.vmem [resolvable:$true] %s45
      %51 = dma.hbm_to_vmem [thread:$0]  %s1, 2048, %s46, [#allocation6], 128, 128, 8
    $region9: #{tpu_custom_call.1} parent=1 // pred_fallthru
      _
    // Predicated region
    $region10: #{tpu_custom_call.1} parent=1 // pred_check
      _
    $region11: #{tpu_custom_call.1} parent=1 // pred_check_branch
      %53 = sbr.rel (0) target = $region13
    $region12: #{tpu_custom_call.1} parent=1 // pred_region
      %s55 = ssub.s32 2048, 2048
      %56 = vsyncadd [#allocation6], %s55
      %s57 = sshll.u32 [#allocation7], 4
      %s58 = int_to_ptr.vmem [resolvable:$true] %s57
      %63 = dma.hbm_to_vmem [thread:$0]  %s2, 2048, %s58, [#allocation6], 128, 128, 8
    $region13: #{tpu_custom_call.1} parent=1 // pred_fallthru
      _
    // Predicated region
    $region14: #{tpu_custom_call.1} parent=1 // pred_check
      _
    $region15: #{tpu_custom_call.1} parent=1 // pred_check_branch
      %65 = sbr.rel (0) target = $region17
    $region16: #{tpu_custom_call.1} parent=1 // pred_region
      _
    $region17: #{tpu_custom_call.1} parent=1 // pred_fallthru
      _
    // Predicated region
    $region18: #{tpu_custom_call.1} parent=1 // pred_check
      _
    $region19: #{tpu_custom_call.1} parent=1 // pred_check_branch
      %67 = sbr.rel (0) target = $region21
    $region20: #{tpu_custom_call.1} parent=1 // pred_region
      _
    $region21: #{tpu_custom_call.1} parent=1 // pred_fallthru
      _
    // Predicated region
    $region22: #{tpu_custom_call.1} parent=1 // pred_check
      _
    $region23: #{tpu_custom_call.1} parent=1 // pred_check_branch
      %69 = sbr.rel (0) target = $region25
    $region24: #{tpu_custom_call.1} parent=1 // pred_region
      %s71 = ssub.s32 256, 256
      %72 = vsyncadd [#allocation9], %s71
      %s73 = sshll.u32 [#allocation8], 4
      %s74 = int_to_ptr.vmem [resolvable:$true] %s73
      %79 = dma.hbm_to_vmem [thread:$0]  %s5, 256, %s74, [#allocation9], 128, 128, 8
    $region25: #{tpu_custom_call.1} parent=1 // pred_fallthru
      _
    // Predicated region
    $region26: #{tpu_custom_call.1} parent=1 // pred_check
      _
    $region27: #{tpu_custom_call.1} parent=1 // pred_check_branch
      %81 = sbr.rel (0) target = $region29
    $region28: #{tpu_custom_call.1} parent=1 // pred_region
      %s83 = ssub.s32 2048, 2048
      %84 = vsyncadd [#allocation9], %s83
      %s85 = sshll.u32 [#allocation10], 4
      %s86 = int_to_ptr.vmem [resolvable:$true] %s85
      %91 = dma.hbm_to_vmem [thread:$0]  %s6, 2048, %s86, [#allocation9], 128, 128, 8
    $region29: #{tpu_custom_call.1} parent=1 // pred_fallthru
      _
    // Predicated region
    $region30: #{tpu_custom_call.1} parent=1 // pred_check
      _
    $region31: #{tpu_custom_call.1} parent=1 // pred_check_branch
      %93 = sbr.rel (0) target = $region33
    $region32: #{tpu_custom_call.1} parent=1 // pred_region
      %s95 = ssub.s32 2048, 2048
      %96 = vsyncadd [#allocation12], %s95
      %s97 = sshll.u32 [#allocation11], 4
      %s98 = int_to_ptr.vmem [resolvable:$true] %s97
      %103 = dma.hbm_to_vmem [thread:$0]  %s7, 2048, %s98, [#allocation12], 128, 128, 8
    $region33: #{tpu_custom_call.1} parent=1 // pred_fallthru
      _
    // Predicated region
    $region34: #{tpu_custom_call.1} parent=1 // pred_check
      _
    $region35: #{tpu_custom_call.1} parent=1 // pred_check_branch
      %105 = sbr.rel (0) target = $region37
    $region36: #{tpu_custom_call.1} parent=1 // pred_region
      %s107 = ssub.s32 16, 16
      %108 = vsyncadd [#allocation12], %s107
      %s110 = sshll.u32 [#allocation13], 4
      %s111 = int_to_ptr.vmem [resolvable:$true] %s110
      %113 = dma.hbm_to_vmem [thread:$0]  %s8, 16, %s111, [#allocation12]
    $region37: #{tpu_custom_call.1} parent=1 // pred_fallthru
      _
    // Predicated region
    $region38: #{tpu_custom_call.1} parent=1 // pred_check
      _
    $region39: #{tpu_custom_call.1} parent=1 // pred_check_branch
      %115 = sbr.rel (0) target = $region41
    $region40: #{tpu_custom_call.1} parent=1 // pred_region
      %s117 = ssub.s32 16, 16
      %118 = vsyncadd [#allocation15], %s117
      %s120 = sshll.u32 [#allocation14], 4
      %s121 = int_to_ptr.vmem [resolvable:$true] %s120
      %123 = dma.hbm_to_vmem [thread:$0]  %s9, 16, %s121, [#allocation15]
    $region41: #{tpu_custom_call.1} parent=1 // pred_fallthru
      _
    // Predicated region
    $region42: #{tpu_custom_call.1} parent=1 // pred_check
      _
    $region43: #{tpu_custom_call.1} parent=1 // pred_check_branch
      %125 = sbr.rel (0) target = $region45
    $region44: #{tpu_custom_call.1} parent=1 // pred_region
      _
    $region45: #{tpu_custom_call.1} parent=1 // pred_fallthru
      _
    // Predicated region
    $region46: #{tpu_custom_call.1} parent=1 // pred_check
      _
    $region47: #{tpu_custom_call.1} parent=1 // pred_check_branch
      %127 = sbr.rel (0) target = $region49
    $region48: #{tpu_custom_call.1} parent=1 // pred_region
      %s129 = ssub.s32 2048, 2048
      %130 = vsyncadd [#allocation15], %s129
      %s131 = sshll.u32 [#allocation16], 4
      %s132 = int_to_ptr.vmem [resolvable:$true] %s131
      %137 = dma.hbm_to_vmem [thread:$0]  %s11, 2048, %s132, [#allocation15], 128, 128, 8
    $region49: #{tpu_custom_call.1} parent=1 // pred_fallthru
      _
    // Predicated region
    $region50: #{tpu_custom_call.1} parent=1 // pred_check
      _
    $region51: #{tpu_custom_call.1} parent=1 // pred_check_branch
      %139 = sbr.rel (0) target = $region53
    $region52: #{tpu_custom_call.1} parent=1 // pred_region
      %s141 = ssub.s32 2048, 2048
      %142 = vsyncadd [#allocation18], %s141
      %s143 = sshll.u32 [#allocation17], 4
      %s144 = int_to_ptr.vmem [resolvable:$true] %s143
      %149 = dma.hbm_to_vmem [thread:$0]  %s12, 2048, %s144, [#allocation18], 128, 128, 8
    $region53: #{tpu_custom_call.1} parent=1 // pred_fallthru
      _
    // Predicated region
    $region54: #{tpu_custom_call.1} parent=1 // pred_check
      _
    $region55: #{tpu_custom_call.1} parent=1 // pred_check_branch
      %151 = sbr.rel (0) target = $region57
    $region56: #{tpu_custom_call.1} parent=1 // pred_region
      _
    $region57: #{tpu_custom_call.1} parent=1 // pred_fallthru
      _
    // Predicated region
    $region58: #{tpu_custom_call.1} parent=1 // pred_check
      _
    $region59: #{tpu_custom_call.1} parent=1 // pred_check_branch
      %153 = sbr.rel (0) target = $region61
    $region60: #{tpu_custom_call.1} parent=1 // pred_region
      _
    $region61: #{tpu_custom_call.1} parent=1 // pred_fallthru
      _
    // Predicated region
    $region62: #{tpu_custom_call.1} parent=1 // pred_check
      _
    $region63: #{tpu_custom_call.1} parent=1 // pred_check_branch
      %155 = sbr.rel (0) target = $region65
    $region64: #{tpu_custom_call.1} parent=1 // pred_region
      %s157 = ssub.s32 256, 256
      %158 = vsyncadd [#allocation18], %s157
      %s159 = sshll.u32 [#allocation19], 4
      %s160 = int_to_ptr.vmem [resolvable:$true] %s159
      %165 = dma.hbm_to_vmem [thread:$0]  %s15, 256, %s160, [#allocation18], 128, 128, 8
    $region65: #{tpu_custom_call.1} parent=1 // pred_fallthru
      _
    // Predicated region
    $region66: #{tpu_custom_call.1} parent=1 // pred_check
      _
    $region67: #{tpu_custom_call.1} parent=1 // pred_check_branch
      %167 = sbr.rel (0) target = $region69
    $region68: #{tpu_custom_call.1} parent=1 // pred_region
      %168 = dma.done [#allocation3], 256
    $region69: #{tpu_custom_call.1} parent=1 // pred_fallthru
      _
    // Predicated region
    $region70: #{tpu_custom_call.1} parent=1 // pred_check
      _
    $region71: #{tpu_custom_call.1} parent=1 // pred_check_branch
      %170 = sbr.rel (0) target = $region73
    $region72: #{tpu_custom_call.1} parent=1 // pred_region
      %171 = dma.done [#allocation6], 2048
    $region73: #{tpu_custom_call.1} parent=1 // pred_fallthru
      _
    // Predicated region
    $region74: #{tpu_custom_call.1} parent=1 // pred_check
      _
    $region75: #{tpu_custom_call.1} parent=1 // pred_check_branch
      %173 = sbr.rel (0) target = $region77
    $region76: #{tpu_custom_call.1} parent=1 // pred_region
      %174 = dma.done [#allocation6], 2048
    $region77: #{tpu_custom_call.1} parent=1 // pred_fallthru
      _
    // Predicated region
    $region78: #{tpu_custom_call.1} parent=1 // pred_check
      _
    $region79: #{tpu_custom_call.1} parent=1 // pred_check_branch
      %176 = sbr.rel (0) target = $region81
    $region80: #{tpu_custom_call.1} parent=1 // pred_region
      %177 = dma.done [#allocation9], 256
    $region81: #{tpu_custom_call.1} parent=1 // pred_fallthru
      _
    // Predicated region
    $region82: #{tpu_custom_call.1} parent=1 // pred_check
      _
    $region83: #{tpu_custom_call.1} parent=1 // pred_check_branch
      %179 = sbr.rel (0) target = $region85
    $region84: #{tpu_custom_call.1} parent=1 // pred_region
      %180 = dma.done [#allocation9], 2048
    $region85: #{tpu_custom_call.1} parent=1 // pred_fallthru
      _
    // Predicated region
    $region86: #{tpu_custom_call.1} parent=1 // pred_check
      _
    $region87: #{tpu_custom_call.1} parent=1 // pred_check_branch
      %182 = sbr.rel (0) target = $region89
    $region88: #{tpu_custom_call.1} parent=1 // pred_region
      %183 = dma.done [#allocation12], 2048
    $region89: #{tpu_custom_call.1} parent=1 // pred_fallthru
      _
    // Predicated region
    $region90: #{tpu_custom_call.1} parent=1 // pred_check
      _
    $region91: #{tpu_custom_call.1} parent=1 // pred_check_branch
      %185 = sbr.rel (0) target = $region93
    $region92: #{tpu_custom_call.1} parent=1 // pred_region
      %186 = dma.done [#allocation12], 16
    $region93: #{tpu_custom_call.1} parent=1 // pred_fallthru
      _
    // Predicated region
    $region94: #{tpu_custom_call.1} parent=1 // pred_check
      _
    $region95: #{tpu_custom_call.1} parent=1 // pred_check_branch
      %188 = sbr.rel (0) target = $region97
    $region96: #{tpu_custom_call.1} parent=1 // pred_region
      %189 = dma.done [#allocation15], 16
    $region97: #{tpu_custom_call.1} parent=1 // pred_fallthru
      _
    // Predicated region
    $region98: #{tpu_custom_call.1} parent=1 // pred_check
      _
    $region99: #{tpu_custom_call.1} parent=1 // pred_check_branch
      %191 = sbr.rel (0) target = $region101
    $region100: #{tpu_custom_call.1} parent=1 // pred_region
      %192 = dma.done [#allocation15], 2048
    $region101: #{tpu_custom_call.1} parent=1 // pred_fallthru
      _
    // Predicated region
    $region102: #{tpu_custom_call.1} parent=1 // pred_check
      _
    $region103: #{tpu_custom_call.1} parent=1 // pred_check_branch
      %194 = sbr.rel (0) target = $region105
    $region104: #{tpu_custom_call.1} parent=1 // pred_region
      %195 = dma.done [#allocation18], 2048
    $region105: #{tpu_custom_call.1} parent=1 // pred_fallthru
      _
    // Predicated region
    $region106: #{tpu_custom_call.1} parent=1 // pred_check
      _
    $region107: #{tpu_custom_call.1} parent=1 // pred_check_branch
      %197 = sbr.rel (0) target = $region109
    $region108: #{tpu_custom_call.1} parent=1 // pred_region
      %198 = dma.done [#allocation18], 256
    $region109: #{tpu_custom_call.1} parent=1 // pred_fallthru
      _
    %v199 = vld [vmem:[#allocation2] sm:$0xff]
    %v200 = vld [vmem:[#allocation2 + $0x8] sm:$0xff]
    %v201 = vld [vmem:[#allocation5] sm:$0xff]
    %v202 = vld [vmem:[#allocation5 + $0x8] sm:$0xff]
    %v203 = vld [vmem:[#allocation5 + $0x10] sm:$0xff]
    %v204 = vld [vmem:[#allocation5 + $0x18] sm:$0xff]
    %v205 = vld [vmem:[#allocation5 + $0x20] sm:$0xff]
    %v206 = vld [vmem:[#allocation5 + $0x28] sm:$0xff]
    %v207 = vld [vmem:[#allocation5 + $0x30] sm:$0xff]
    %v208 = vld [vmem:[#allocation5 + $0x38] sm:$0xff]
    %v209 = vld [vmem:[#allocation5 + $0x40] sm:$0xff]
    %v210 = vld [vmem:[#allocation5 + $0x48] sm:$0xff]
    %v211 = vld [vmem:[#allocation5 + $0x50] sm:$0xff]
    %v212 = vld [vmem:[#allocation5 + $0x58] sm:$0xff]
    %v213 = vld [vmem:[#allocation5 + $0x60] sm:$0xff]
    %v214 = vld [vmem:[#allocation5 + $0x68] sm:$0xff]
    %v215 = vld [vmem:[#allocation5 + $0x70] sm:$0xff]
    %v216 = vld [vmem:[#allocation5 + $0x78] sm:$0xff]
    %v217 = vld [vmem:[%s3] sm:$0x1]
    %v219 = vlaneseq
    %v220 = vshrl.u32 %v219, 7
    %v221 = vsub.s32 0, %v220
    %v222 = vrot.slane %v217, %v221
    %224 = vmatprep.subr.mxu0 0.0
    %225 = vmatpush1.msra.mxu0 %v216
    %226 = vmatprep.subr.mxu0 0.0
    %227 = vmatpush1.msra.mxu0 %v215
    %228 = vmatprep.subr.mxu0 0.0
    %229 = vmatpush1.msra.mxu0 %v214
    %230 = vmatprep.subr.mxu0 0.0
    %231 = vmatpush1.msra.mxu0 %v213
    %232 = vmatprep.subr.mxu0 0.0
    %233 = vmatpush1.msra.mxu0 %v212
    %234 = vmatprep.subr.mxu0 0.0
    %235 = vmatpush1.msra.mxu0 %v211
    %236 = vmatprep.subr.mxu0 0.0
    %237 = vmatpush1.msra.mxu0 %v210
    %238 = vmatprep.subr.mxu0 0.0
    %239 = vmatpush1.msra.mxu0 %v209
    %240 = vmatprep.subr.mxu0 0.0
    %241 = vmatpush1.msra.mxu0 %v208
    %242 = vmatprep.subr.mxu0 0.0
    %243 = vmatpush1.msra.mxu0 %v207
    %244 = vmatprep.subr.mxu0 0.0
    %245 = vmatpush1.msra.mxu0 %v206
    %246 = vmatprep.subr.mxu0 0.0
    %247 = vmatpush1.msra.mxu0 %v205
    %248 = vmatprep.subr.mxu0 0.0
    %249 = vmatpush1.msra.mxu0 %v204
    %250 = vmatprep.subr.mxu0 0.0
    %251 = vmatpush1.msra.mxu0 %v203
    %252 = vmatprep.subr.mxu0 0.0
    %253 = vmatpush1.msra.mxu0 %v202
    %254 = vmatprep.subr.mxu0 0.0
    %255 = vmatpush1.msra.mxu0 %v201
    %256 = vmatprep.subr.mxu0 0.0
    %257 = vmatpush2.msra.mxu0 0.0
    %258 = vmatprep.subr.mxu0 0.0
    %259 = vmatpush2.msra.mxu0 0.0
    %260 = vmatprep.subr.mxu0 0.0
    %261 = vmatpush2.msra.mxu0 0.0
    %262 = vmatprep.subr.mxu0 0.0
    %263 = vmatpush2.msra.mxu0 0.0
    %264 = vmatprep.subr.mxu0 0.0
    %265 = vmatpush2.msra.mxu0 0.0
    %266 = vmatprep.subr.mxu0 0.0
    %267 = vmatpush2.msra.mxu0 0.0
    %268 = vmatprep.subr.mxu0 0.0
    %269 = vmatpush2.msra.mxu0 0.0
    %270 = vmatprep.subr.mxu0 0.0
    %271 = vmatpush2.msra.mxu0 0.0
    %272 = vmatprep.subr.mxu0 0.0
    %273 = vmatpush2.msra.mxu0 0.0
    %274 = vmatprep.subr.mxu0 0.0
    %275 = vmatpush2.msra.mxu0 0.0
    %276 = vmatprep.subr.mxu0 0.0
    %277 = vmatpush2.msra.mxu0 0.0
    %278 = vmatprep.subr.mxu0 0.0
    %279 = vmatpush2.msra.mxu0 0.0
    %280 = vmatprep.subr.mxu0 0.0
    %281 = vmatpush2.msra.mxu0 0.0
    %282 = vmatprep.subr.mxu0 0.0
    %283 = vmatpush2.msra.mxu0 0.0
    %284 = vmatprep.subr.mxu0 0.0
    %285 = vmatpush2.msra.mxu0 0.0
    %286 = vmatprep.subr.mxu0 0.0
    %287 = vmatpush2.msra.mxu0 0.0
    %288 = vmatprep.mubr.f32.mxu0 0.0
    %289 = vmatmul.mubr.f32.gmra.mxu0 %v199
    %v290 = vpop.f32.mrf.mxu0
    %v291 = vadd.f32 %v222, %v290
    %v292 = vpop.f32.mrf.mxu0
    %293 = vmatprep.mubr.f32.mxu0 0.0
    %294 = vmatmul.mubr.f32.gmra.mxu0 %v200
    %v295 = vpop.f32.mrf.mxu0
    %v296 = vadd.f32 %v222, %v295
    %v297 = vpop.f32.mrf.mxu0
    %298 = vdwg.mxu0
    %v299 = vmul.f32 %v199, %v199
    %v300 = vmul.f32 %v200, %v200
    %v301 = vld [vmem:[#allocation7] sm:$0xff]
    %v302 = vld [vmem:[#allocation7 + $0x8] sm:$0xff]
    %v303 = vld [vmem:[#allocation7 + $0x10] sm:$0xff]
    %v304 = vld [vmem:[#allocation7 + $0x18] sm:$0xff]
    %v305 = vld [vmem:[#allocation7 + $0x20] sm:$0xff]
    %v306 = vld [vmem:[#allocation7 + $0x28] sm:$0xff]
    %v307 = vld [vmem:[#allocation7 + $0x30] sm:$0xff]
    %v308 = vld [vmem:[#allocation7 + $0x38] sm:$0xff]
    %v309 = vld [vmem:[#allocation7 + $0x40] sm:$0xff]
    %v310 = vld [vmem:[#allocation7 + $0x48] sm:$0xff]
    %v311 = vld [vmem:[#allocation7 + $0x50] sm:$0xff]
    %v312 = vld [vmem:[#allocation7 + $0x58] sm:$0xff]
    %v313 = vld [vmem:[#allocation7 + $0x60] sm:$0xff]
    %v314 = vld [vmem:[#allocation7 + $0x68] sm:$0xff]
    %v315 = vld [vmem:[#allocation7 + $0x70] sm:$0xff]
    %v316 = vld [vmem:[#allocation7 + $0x78] sm:$0xff]
    %v317 = vld [vmem:[%s4] sm:$0x1]
    %v319 = vlaneseq
    %v320 = vshrl.u32 %v319, 7
    %v321 = vsub.s32 0, %v320
    %v322 = vrot.slane %v317, %v321
    %324 = vmatprep.subr.mxu0 0.0
    %325 = vmatpush1.msra.mxu0 %v316
    %326 = vmatprep.subr.mxu0 0.0
    %327 = vmatpush1.msra.mxu0 %v315
    %328 = vmatprep.subr.mxu0 0.0
    %329 = vmatpush1.msra.mxu0 %v314
    %330 = vmatprep.subr.mxu0 0.0
    %331 = vmatpush1.msra.mxu0 %v313
    %332 = vmatprep.subr.mxu0 0.0
    %333 = vmatpush1.msra.mxu0 %v312
    %334 = vmatprep.subr.mxu0 0.0
    %335 = vmatpush1.msra.mxu0 %v311
    %336 = vmatprep.subr.mxu0 0.0
    %337 = vmatpush1.msra.mxu0 %v310
    %338 = vmatprep.subr.mxu0 0.0
    %339 = vmatpush1.msra.mxu0 %v309
    %340 = vmatprep.subr.mxu0 0.0
    %341 = vmatpush1.msra.mxu0 %v308
    %342 = vmatprep.subr.mxu0 0.0
    %343 = vmatpush1.msra.mxu0 %v307
    %344 = vmatprep.subr.mxu0 0.0
    %345 = vmatpush1.msra.mxu0 %v306
    %346 = vmatprep.subr.mxu0 0.0
    %347 = vmatpush1.msra.mxu0 %v305
    %348 = vmatprep.subr.mxu0 0.0
    %349 = vmatpush1.msra.mxu0 %v304
    %350 = vmatprep.subr.mxu0 0.0
    %351 = vmatpush1.msra.mxu0 %v303
    %352 = vmatprep.subr.mxu0 0.0
    %353 = vmatpush1.msra.mxu0 %v302
    %354 = vmatprep.subr.mxu0 0.0
    %355 = vmatpush1.msra.mxu0 %v301
    %356 = vmatprep.subr.mxu0 0.0
    %357 = vmatpush2.msra.mxu0 0.0
    %358 = vmatprep.subr.mxu0 0.0
    %359 = vmatpush2.msra.mxu0 0.0
    %360 = vmatprep.subr.mxu0 0.0
    %361 = vmatpush2.msra.mxu0 0.0
    %362 = vmatprep.subr.mxu0 0.0
    %363 = vmatpush2.msra.mxu0 0.0
    %364 = vmatprep.subr.mxu0 0.0
    %365 = vmatpush2.msra.mxu0 0.0
    %366 = vmatprep.subr.mxu0 0.0
    %367 = vmatpush2.msra.mxu0 0.0
    %368 = vmatprep.subr.mxu0 0.0
    %369 = vmatpush2.msra.mxu0 0.0
    %370 = vmatprep.subr.mxu0 0.0
    %371 = vmatpush2.msra.mxu0 0.0
    %372 = vmatprep.subr.mxu0 0.0
    %373 = vmatpush2.msra.mxu0 0.0
    %374 = vmatprep.subr.mxu0 0.0
    %375 = vmatpush2.msra.mxu0 0.0
    %376 = vmatprep.subr.mxu0 0.0
    %377 = vmatpush2.msra.mxu0 0.0
    %378 = vmatprep.subr.mxu0 0.0
    %379 = vmatpush2.msra.mxu0 0.0
    %380 = vmatprep.subr.mxu0 0.0
    %381 = vmatpush2.msra.mxu0 0.0
    %382 = vmatprep.subr.mxu0 0.0
    %383 = vmatpush2.msra.mxu0 0.0
    %384 = vmatprep.subr.mxu0 0.0
    %385 = vmatpush2.msra.mxu0 0.0
    %386 = vmatprep.subr.mxu0 0.0
    %387 = vmatpush2.msra.mxu0 0.0
    %388 = vmatprep.mubr.f32.mxu0 0.0
    %389 = vmatmul.mubr.f32.gmra.mxu0 %v299
    %v390 = vpop.f32.mrf.mxu0
    %v391 = vadd.f32 %v322, %v390
    %v392 = vpop.f32.mrf.mxu0
    %393 = vmatprep.mubr.f32.mxu0 0.0
    %394 = vmatmul.mubr.f32.gmra.mxu0 %v300
    %v395 = vpop.f32.mrf.mxu0
    %v396 = vadd.f32 %v322, %v395
    %v397 = vpop.f32.mrf.mxu0
    %398 = vdwg.mxu0
    %v399 = vrsqrt.pop %v391
    %v400 = vmul.f32 %v391, %v399
    %vm401 = vcmp.eq.f32.partialorder %v391, inf
    %v402 = vsel %vm401, %v391, %v400
    %vm403 = vcmp.eq.f32.partialorder %v391, 0.0
    %v404 = vand.u32 %v391, 2147483648
    %v405 = vsel %vm403, %v404, %v402
    %v406 = vrsqrt.pop %v396
    %v407 = vmul.f32 %v396, %v406
    %vm408 = vcmp.eq.f32.partialorder %v396, inf
    %v409 = vsel %vm408, %v396, %v407
    %vm410 = vcmp.eq.f32.partialorder %v396, 0.0
    %v411 = vand.u32 %v396, 2147483648
    %v412 = vsel %vm410, %v411, %v409
    %v413 = vld [vmem:[#allocation8] sm:$0xff]
    %v414 = vld [vmem:[#allocation8 + $0x8] sm:$0xff]
    %v415 = vmul.f32 %v405, %v413
    %v416 = vmul.f32 %v412, %v414
    %v417 = vadd.f32 %v291, %v415
    %v418 = vadd.f32 %v296, %v416
    %v419 = vmax.f32 %v417, 0.0
    %v420 = vmax.f32 %v418, 0.0
    %v421 = vld [vmem:[#allocation10] sm:$0xff]
    %v422 = vld [vmem:[#allocation10 + $0x8] sm:$0xff]
    %v423 = vld [vmem:[#allocation10 + $0x10] sm:$0xff]
    %v424 = vld [vmem:[#allocation10 + $0x18] sm:$0xff]
    %v425 = vld [vmem:[#allocation10 + $0x20] sm:$0xff]
    %v426 = vld [vmem:[#allocation10 + $0x28] sm:$0xff]
    %v427 = vld [vmem:[#allocation10 + $0x30] sm:$0xff]
    %v428 = vld [vmem:[#allocation10 + $0x38] sm:$0xff]
    %v429 = vld [vmem:[#allocation10 + $0x40] sm:$0xff]
    %v430 = vld [vmem:[#allocation10 + $0x48] sm:$0xff]
    %v431 = vld [vmem:[#allocation10 + $0x50] sm:$0xff]
    %v432 = vld [vmem:[#allocation10 + $0x58] sm:$0xff]
    %v433 = vld [vmem:[#allocation10 + $0x60] sm:$0xff]
    %v434 = vld [vmem:[#allocation10 + $0x68] sm:$0xff]
    %v435 = vld [vmem:[#allocation10 + $0x70] sm:$0xff]
    %v436 = vld [vmem:[#allocation10 + $0x78] sm:$0xff]
    %v437 = vld [vmem:[#allocation13] sm:$0x1]
    %v439 = vlaneseq
    %v440 = vshrl.u32 %v439, 7
    %v441 = vsub.s32 0, %v440
    %v442 = vrot.slane %v437, %v441
    %444 = vmatprep.subr.mxu0 0.0
    %445 = vmatpush1.msra.mxu0 %v436
    %446 = vmatprep.subr.mxu0 0.0
    %447 = vmatpush1.msra.mxu0 %v435
    %448 = vmatprep.subr.mxu0 0.0
    %449 = vmatpush1.msra.mxu0 %v434
    %450 = vmatprep.subr.mxu0 0.0
    %451 = vmatpush1.msra.mxu0 %v433
    %452 = vmatprep.subr.mxu0 0.0
    %453 = vmatpush1.msra.mxu0 %v432
    %454 = vmatprep.subr.mxu0 0.0
    %455 = vmatpush1.msra.mxu0 %v431
    %456 = vmatprep.subr.mxu0 0.0
    %457 = vmatpush1.msra.mxu0 %v430
    %458 = vmatprep.subr.mxu0 0.0
    %459 = vmatpush1.msra.mxu0 %v429
    %460 = vmatprep.subr.mxu0 0.0
    %461 = vmatpush1.msra.mxu0 %v428
    %462 = vmatprep.subr.mxu0 0.0
    %463 = vmatpush1.msra.mxu0 %v427
    %464 = vmatprep.subr.mxu0 0.0
    %465 = vmatpush1.msra.mxu0 %v426
    %466 = vmatprep.subr.mxu0 0.0
    %467 = vmatpush1.msra.mxu0 %v425
    %468 = vmatprep.subr.mxu0 0.0
    %469 = vmatpush1.msra.mxu0 %v424
    %470 = vmatprep.subr.mxu0 0.0
    %471 = vmatpush1.msra.mxu0 %v423
    %472 = vmatprep.subr.mxu0 0.0
    %473 = vmatpush1.msra.mxu0 %v422
    %474 = vmatprep.subr.mxu0 0.0
    %475 = vmatpush1.msra.mxu0 %v421
    %476 = vmatprep.subr.mxu0 0.0
    %477 = vmatpush2.msra.mxu0 0.0
    %478 = vmatprep.subr.mxu0 0.0
    %479 = vmatpush2.msra.mxu0 0.0
    %480 = vmatprep.subr.mxu0 0.0
    %481 = vmatpush2.msra.mxu0 0.0
    %482 = vmatprep.subr.mxu0 0.0
    %483 = vmatpush2.msra.mxu0 0.0
    %484 = vmatprep.subr.mxu0 0.0
    %485 = vmatpush2.msra.mxu0 0.0
    %486 = vmatprep.subr.mxu0 0.0
    %487 = vmatpush2.msra.mxu0 0.0
    %488 = vmatprep.subr.mxu0 0.0
    %489 = vmatpush2.msra.mxu0 0.0
    %490 = vmatprep.subr.mxu0 0.0
    %491 = vmatpush2.msra.mxu0 0.0
    %492 = vmatprep.subr.mxu0 0.0
    %493 = vmatpush2.msra.mxu0 0.0
    %494 = vmatprep.subr.mxu0 0.0
    %495 = vmatpush2.msra.mxu0 0.0
    %496 = vmatprep.subr.mxu0 0.0
    %497 = vmatpush2.msra.mxu0 0.0
    %498 = vmatprep.subr.mxu0 0.0
    %499 = vmatpush2.msra.mxu0 0.0
    %500 = vmatprep.subr.mxu0 0.0
    %501 = vmatpush2.msra.mxu0 0.0
    %502 = vmatprep.subr.mxu0 0.0
    %503 = vmatpush2.msra.mxu0 0.0
    %504 = vmatprep.subr.mxu0 0.0
    %505 = vmatpush2.msra.mxu0 0.0
    %506 = vmatprep.subr.mxu0 0.0
    %507 = vmatpush2.msra.mxu0 0.0
    %508 = vmatprep.mubr.f32.mxu0 0.0
    %509 = vmatmul.mubr.f32.gmra.mxu0 %v419
    %v510 = vpop.f32.mrf.mxu0
    %v511 = vadd.f32 %v442, %v510
    %v512 = vpop.f32.mrf.mxu0
    %513 = vmatprep.mubr.f32.mxu0 0.0
    %514 = vmatmul.mubr.f32.gmra.mxu0 %v420
    %v515 = vpop.f32.mrf.mxu0
    %v516 = vadd.f32 %v442, %v515
    %v517 = vpop.f32.mrf.mxu0
    %518 = vdwg.mxu0
    %v519 = vmul.f32 %v419, %v419
    %v520 = vmul.f32 %v420, %v420
    %v521 = vld [vmem:[#allocation11] sm:$0xff]
    %v522 = vld [vmem:[#allocation11 + $0x8] sm:$0xff]
    %v523 = vld [vmem:[#allocation11 + $0x10] sm:$0xff]
    %v524 = vld [vmem:[#allocation11 + $0x18] sm:$0xff]
    %v525 = vld [vmem:[#allocation11 + $0x20] sm:$0xff]
    %v526 = vld [vmem:[#allocation11 + $0x28] sm:$0xff]
    %v527 = vld [vmem:[#allocation11 + $0x30] sm:$0xff]
    %v528 = vld [vmem:[#allocation11 + $0x38] sm:$0xff]
    %v529 = vld [vmem:[#allocation11 + $0x40] sm:$0xff]
    %v530 = vld [vmem:[#allocation11 + $0x48] sm:$0xff]
    %v531 = vld [vmem:[#allocation11 + $0x50] sm:$0xff]
    %v532 = vld [vmem:[#allocation11 + $0x58] sm:$0xff]
    %v533 = vld [vmem:[#allocation11 + $0x60] sm:$0xff]
    %v534 = vld [vmem:[#allocation11 + $0x68] sm:$0xff]
    %v535 = vld [vmem:[#allocation11 + $0x70] sm:$0xff]
    %v536 = vld [vmem:[#allocation11 + $0x78] sm:$0xff]
    %v537 = vld [vmem:[#allocation14] sm:$0x1]
    %v539 = vlaneseq
    %v540 = vshrl.u32 %v539, 7
    %v541 = vsub.s32 0, %v540
    %v542 = vrot.slane %v537, %v541
    %544 = vmatprep.subr.mxu0 0.0
    %545 = vmatpush1.msra.mxu0 %v536
    %546 = vmatprep.subr.mxu0 0.0
    %547 = vmatpush1.msra.mxu0 %v535
    %548 = vmatprep.subr.mxu0 0.0
    %549 = vmatpush1.msra.mxu0 %v534
    %550 = vmatprep.subr.mxu0 0.0
    %551 = vmatpush1.msra.mxu0 %v533
    %552 = vmatprep.subr.mxu0 0.0
    %553 = vmatpush1.msra.mxu0 %v532
    %554 = vmatprep.subr.mxu0 0.0
    %555 = vmatpush1.msra.mxu0 %v531
    %556 = vmatprep.subr.mxu0 0.0
    %557 = vmatpush1.msra.mxu0 %v530
    %558 = vmatprep.subr.mxu0 0.0
    %559 = vmatpush1.msra.mxu0 %v529
    %560 = vmatprep.subr.mxu0 0.0
    %561 = vmatpush1.msra.mxu0 %v528
    %562 = vmatprep.subr.mxu0 0.0
    %563 = vmatpush1.msra.mxu0 %v527
    %564 = vmatprep.subr.mxu0 0.0
    %565 = vmatpush1.msra.mxu0 %v526
    %566 = vmatprep.subr.mxu0 0.0
    %567 = vmatpush1.msra.mxu0 %v525
    %568 = vmatprep.subr.mxu0 0.0
    %569 = vmatpush1.msra.mxu0 %v524
    %570 = vmatprep.subr.mxu0 0.0
    %571 = vmatpush1.msra.mxu0 %v523
    %572 = vmatprep.subr.mxu0 0.0
    %573 = vmatpush1.msra.mxu0 %v522
    %574 = vmatprep.subr.mxu0 0.0
    %575 = vmatpush1.msra.mxu0 %v521
    %576 = vmatprep.subr.mxu0 0.0
    %577 = vmatpush2.msra.mxu0 0.0
    %578 = vmatprep.subr.mxu0 0.0
    %579 = vmatpush2.msra.mxu0 0.0
    %580 = vmatprep.subr.mxu0 0.0
    %581 = vmatpush2.msra.mxu0 0.0
    %582 = vmatprep.subr.mxu0 0.0
    %583 = vmatpush2.msra.mxu0 0.0
    %584 = vmatprep.subr.mxu0 0.0
    %585 = vmatpush2.msra.mxu0 0.0
    %586 = vmatprep.subr.mxu0 0.0
    %587 = vmatpush2.msra.mxu0 0.0
    %588 = vmatprep.subr.mxu0 0.0
    %589 = vmatpush2.msra.mxu0 0.0
    %590 = vmatprep.subr.mxu0 0.0
    %591 = vmatpush2.msra.mxu0 0.0
    %592 = vmatprep.subr.mxu0 0.0
    %593 = vmatpush2.msra.mxu0 0.0
    %594 = vmatprep.subr.mxu0 0.0
    %595 = vmatpush2.msra.mxu0 0.0
    %596 = vmatprep.subr.mxu0 0.0
    %597 = vmatpush2.msra.mxu0 0.0
    %598 = vmatprep.subr.mxu0 0.0
    %599 = vmatpush2.msra.mxu0 0.0
    %600 = vmatprep.subr.mxu0 0.0
    %601 = vmatpush2.msra.mxu0 0.0
    %602 = vmatprep.subr.mxu0 0.0
    %603 = vmatpush2.msra.mxu0 0.0
    %604 = vmatprep.subr.mxu0 0.0
    %605 = vmatpush2.msra.mxu0 0.0
    %606 = vmatprep.subr.mxu0 0.0
    %607 = vmatpush2.msra.mxu0 0.0
    %608 = vmatprep.mubr.f32.mxu0 0.0
    %609 = vmatmul.mubr.f32.gmra.mxu0 %v519
    %v610 = vpop.f32.mrf.mxu0
    %v611 = vadd.f32 %v542, %v610
    %v612 = vpop.f32.mrf.mxu0
    %613 = vmatprep.mubr.f32.mxu0 0.0
    %614 = vmatmul.mubr.f32.gmra.mxu0 %v520
    %v615 = vpop.f32.mrf.mxu0
    %v616 = vadd.f32 %v542, %v615
    %v617 = vpop.f32.mrf.mxu0
    %618 = vdwg.mxu0
    %v619 = vrsqrt.pop %v611
    %v620 = vmul.f32 %v611, %v619
    %vm621 = vcmp.eq.f32.partialorder %v611, inf
    %v622 = vsel %vm621, %v611, %v620
    %vm623 = vcmp.eq.f32.partialorder %v611, 0.0
    %v624 = vand.u32 %v611, 2147483648
    %v625 = vsel %vm623, %v624, %v622
    %v626 = vrsqrt.pop %v616
    %v627 = vmul.f32 %v616, %v626
    %vm628 = vcmp.eq.f32.partialorder %v616, inf
    %v629 = vsel %vm628, %v616, %v627
    %vm630 = vcmp.eq.f32.partialorder %v616, 0.0
    %v631 = vand.u32 %v616, 2147483648
    %v632 = vsel %vm630, %v631, %v629
    %v633 = vld [vmem:[%s10] sm:$0xff]
    %v634 = vld [vmem:[%s10 + $0x8] sm:$0xff]
    %v635 = vmul.f32 %v625, %v633
    %v636 = vmul.f32 %v632, %v634
    %v637 = vadd.f32 %v511, %v635
    %v638 = vadd.f32 %v516, %v636
    %v639 = vmax.f32 %v637, 0.0
    %v640 = vmax.f32 %v638, 0.0
    %v641 = vld [vmem:[#allocation16] sm:$0xff]
    %v642 = vld [vmem:[#allocation16 + $0x8] sm:$0xff]
    %v643 = vld [vmem:[#allocation16 + $0x10] sm:$0xff]
    %v644 = vld [vmem:[#allocation16 + $0x18] sm:$0xff]
    %v645 = vld [vmem:[#allocation16 + $0x20] sm:$0xff]
    %v646 = vld [vmem:[#allocation16 + $0x28] sm:$0xff]
    %v647 = vld [vmem:[#allocation16 + $0x30] sm:$0xff]
    %v648 = vld [vmem:[#allocation16 + $0x38] sm:$0xff]
    %v649 = vld [vmem:[#allocation16 + $0x40] sm:$0xff]
    %v650 = vld [vmem:[#allocation16 + $0x48] sm:$0xff]
    %v651 = vld [vmem:[#allocation16 + $0x50] sm:$0xff]
    %v652 = vld [vmem:[#allocation16 + $0x58] sm:$0xff]
    %v653 = vld [vmem:[#allocation16 + $0x60] sm:$0xff]
    %v654 = vld [vmem:[#allocation16 + $0x68] sm:$0xff]
    %v655 = vld [vmem:[#allocation16 + $0x70] sm:$0xff]
    %v656 = vld [vmem:[#allocation16 + $0x78] sm:$0xff]
    %v657 = vld [vmem:[%s13] sm:$0x1]
    %v659 = vlaneseq
    %v660 = vshrl.u32 %v659, 7
    %v661 = vsub.s32 0, %v660
    %v662 = vrot.slane %v657, %v661
    %664 = vmatprep.subr.mxu0 0.0
    %665 = vmatpush1.msra.mxu0 %v656
    %666 = vmatprep.subr.mxu0 0.0
    %667 = vmatpush1.msra.mxu0 %v655
    %668 = vmatprep.subr.mxu0 0.0
    %669 = vmatpush1.msra.mxu0 %v654
    %670 = vmatprep.subr.mxu0 0.0
    %671 = vmatpush1.msra.mxu0 %v653
    %672 = vmatprep.subr.mxu0 0.0
    %673 = vmatpush1.msra.mxu0 %v652
    %674 = vmatprep.subr.mxu0 0.0
    %675 = vmatpush1.msra.mxu0 %v651
    %676 = vmatprep.subr.mxu0 0.0
    %677 = vmatpush1.msra.mxu0 %v650
    %678 = vmatprep.subr.mxu0 0.0
    %679 = vmatpush1.msra.mxu0 %v649
    %680 = vmatprep.subr.mxu0 0.0
    %681 = vmatpush1.msra.mxu0 %v648
    %682 = vmatprep.subr.mxu0 0.0
    %683 = vmatpush1.msra.mxu0 %v647
    %684 = vmatprep.subr.mxu0 0.0
    %685 = vmatpush1.msra.mxu0 %v646
    %686 = vmatprep.subr.mxu0 0.0
    %687 = vmatpush1.msra.mxu0 %v645
    %688 = vmatprep.subr.mxu0 0.0
    %689 = vmatpush1.msra.mxu0 %v644
    %690 = vmatprep.subr.mxu0 0.0
    %691 = vmatpush1.msra.mxu0 %v643
    %692 = vmatprep.subr.mxu0 0.0
    %693 = vmatpush1.msra.mxu0 %v642
    %694 = vmatprep.subr.mxu0 0.0
    %695 = vmatpush1.msra.mxu0 %v641
    %696 = vmatprep.subr.mxu0 0.0
    %697 = vmatpush2.msra.mxu0 0.0
    %698 = vmatprep.subr.mxu0 0.0
    %699 = vmatpush2.msra.mxu0 0.0
    %700 = vmatprep.subr.mxu0 0.0
    %701 = vmatpush2.msra.mxu0 0.0
    %702 = vmatprep.subr.mxu0 0.0
    %703 = vmatpush2.msra.mxu0 0.0
    %704 = vmatprep.subr.mxu0 0.0
    %705 = vmatpush2.msra.mxu0 0.0
    %706 = vmatprep.subr.mxu0 0.0
    %707 = vmatpush2.msra.mxu0 0.0
    %708 = vmatprep.subr.mxu0 0.0
    %709 = vmatpush2.msra.mxu0 0.0
    %710 = vmatprep.subr.mxu0 0.0
    %711 = vmatpush2.msra.mxu0 0.0
    %712 = vmatprep.subr.mxu0 0.0
    %713 = vmatpush2.msra.mxu0 0.0
    %714 = vmatprep.subr.mxu0 0.0
    %715 = vmatpush2.msra.mxu0 0.0
    %716 = vmatprep.subr.mxu0 0.0
    %717 = vmatpush2.msra.mxu0 0.0
    %718 = vmatprep.subr.mxu0 0.0
    %719 = vmatpush2.msra.mxu0 0.0
    %720 = vmatprep.subr.mxu0 0.0
    %721 = vmatpush2.msra.mxu0 0.0
    %722 = vmatprep.subr.mxu0 0.0
    %723 = vmatpush2.msra.mxu0 0.0
    %724 = vmatprep.subr.mxu0 0.0
    %725 = vmatpush2.msra.mxu0 0.0
    %726 = vmatprep.subr.mxu0 0.0
    %727 = vmatpush2.msra.mxu0 0.0
    %728 = vmatprep.mubr.f32.mxu0 0.0
    %729 = vmatmul.mubr.f32.gmra.mxu0 %v639
    %v730 = vpop.f32.mrf.mxu0
    %v731 = vadd.f32 %v662, %v730
    %v732 = vpop.f32.mrf.mxu0
    %733 = vmatprep.mubr.f32.mxu0 0.0
    %734 = vmatmul.mubr.f32.gmra.mxu0 %v640
    %v735 = vpop.f32.mrf.mxu0
    %v736 = vadd.f32 %v662, %v735
    %v737 = vpop.f32.mrf.mxu0
    %738 = vdwg.mxu0
    %v739 = vmul.f32 %v639, %v639
    %v740 = vmul.f32 %v640, %v640
    %v741 = vld [vmem:[#allocation17] sm:$0xff]
    %v742 = vld [vmem:[#allocation17 + $0x8] sm:$0xff]
    %v743 = vld [vmem:[#allocation17 + $0x10] sm:$0xff]
    %v744 = vld [vmem:[#allocation17 + $0x18] sm:$0xff]
    %v745 = vld [vmem:[#allocation17 + $0x20] sm:$0xff]
    %v746 = vld [vmem:[#allocation17 + $0x28] sm:$0xff]
    %v747 = vld [vmem:[#allocation17 + $0x30] sm:$0xff]
    %v748 = vld [vmem:[#allocation17 + $0x38] sm:$0xff]
    %v749 = vld [vmem:[#allocation17 + $0x40] sm:$0xff]
    %v750 = vld [vmem:[#allocation17 + $0x48] sm:$0xff]
    %v751 = vld [vmem:[#allocation17 + $0x50] sm:$0xff]
    %v752 = vld [vmem:[#allocation17 + $0x58] sm:$0xff]
    %v753 = vld [vmem:[#allocation17 + $0x60] sm:$0xff]
    %v754 = vld [vmem:[#allocation17 + $0x68] sm:$0xff]
    %v755 = vld [vmem:[#allocation17 + $0x70] sm:$0xff]
    %v756 = vld [vmem:[#allocation17 + $0x78] sm:$0xff]
    %v757 = vld [vmem:[%s14] sm:$0x1]
    %v759 = vlaneseq
    %v760 = vshrl.u32 %v759, 7
    %v761 = vsub.s32 0, %v760
    %v762 = vrot.slane %v757, %v761
    %764 = vmatprep.subr.mxu0 0.0
    %765 = vmatpush1.msra.mxu0 %v756
    %766 = vmatprep.subr.mxu0 0.0
    %767 = vmatpush1.msra.mxu0 %v755
    %768 = vmatprep.subr.mxu0 0.0
    %769 = vmatpush1.msra.mxu0 %v754
    %770 = vmatprep.subr.mxu0 0.0
    %771 = vmatpush1.msra.mxu0 %v753
    %772 = vmatprep.subr.mxu0 0.0
    %773 = vmatpush1.msra.mxu0 %v752
    %774 = vmatprep.subr.mxu0 0.0
    %775 = vmatpush1.msra.mxu0 %v751
    %776 = vmatprep.subr.mxu0 0.0
    %777 = vmatpush1.msra.mxu0 %v750
    %778 = vmatprep.subr.mxu0 0.0
    %779 = vmatpush1.msra.mxu0 %v749
    %780 = vmatprep.subr.mxu0 0.0
    %781 = vmatpush1.msra.mxu0 %v748
    %782 = vmatprep.subr.mxu0 0.0
    %783 = vmatpush1.msra.mxu0 %v747
    %784 = vmatprep.subr.mxu0 0.0
    %785 = vmatpush1.msra.mxu0 %v746
    %786 = vmatprep.subr.mxu0 0.0
    %787 = vmatpush1.msra.mxu0 %v745
    %788 = vmatprep.subr.mxu0 0.0
    %789 = vmatpush1.msra.mxu0 %v744
    %790 = vmatprep.subr.mxu0 0.0
    %791 = vmatpush1.msra.mxu0 %v743
    %792 = vmatprep.subr.mxu0 0.0
    %793 = vmatpush1.msra.mxu0 %v742
    %794 = vmatprep.subr.mxu0 0.0
    %795 = vmatpush1.msra.mxu0 %v741
    %796 = vmatprep.subr.mxu0 0.0
    %797 = vmatpush2.msra.mxu0 0.0
    %798 = vmatprep.subr.mxu0 0.0
    %799 = vmatpush2.msra.mxu0 0.0
    %800 = vmatprep.subr.mxu0 0.0
    %801 = vmatpush2.msra.mxu0 0.0
    %802 = vmatprep.subr.mxu0 0.0
    %803 = vmatpush2.msra.mxu0 0.0
    %804 = vmatprep.subr.mxu0 0.0
    %805 = vmatpush2.msra.mxu0 0.0
    %806 = vmatprep.subr.mxu0 0.0
    %807 = vmatpush2.msra.mxu0 0.0
    %808 = vmatprep.subr.mxu0 0.0
    %809 = vmatpush2.msra.mxu0 0.0
    %810 = vmatprep.subr.mxu0 0.0
    %811 = vmatpush2.msra.mxu0 0.0
    %812 = vmatprep.subr.mxu0 0.0
    %813 = vmatpush2.msra.mxu0 0.0
    %814 = vmatprep.subr.mxu0 0.0
    %815 = vmatpush2.msra.mxu0 0.0
    %816 = vmatprep.subr.mxu0 0.0
    %817 = vmatpush2.msra.mxu0 0.0
    %818 = vmatprep.subr.mxu0 0.0
    %819 = vmatpush2.msra.mxu0 0.0
    %820 = vmatprep.subr.mxu0 0.0
    %821 = vmatpush2.msra.mxu0 0.0
    %822 = vmatprep.subr.mxu0 0.0
    %823 = vmatpush2.msra.mxu0 0.0
    %824 = vmatprep.subr.mxu0 0.0
    %825 = vmatpush2.msra.mxu0 0.0
    %826 = vmatprep.subr.mxu0 0.0
    %827 = vmatpush2.msra.mxu0 0.0
    %828 = vmatprep.mubr.f32.mxu0 0.0
    %829 = vmatmul.mubr.f32.gmra.mxu0 %v739
    %v830 = vpop.f32.mrf.mxu0
    %v831 = vadd.f32 %v762, %v830
    %v832 = vpop.f32.mrf.mxu0
    %833 = vmatprep.mubr.f32.mxu0 0.0
    %834 = vmatmul.mubr.f32.gmra.mxu0 %v740
    %v835 = vpop.f32.mrf.mxu0
    %v836 = vadd.f32 %v762, %v835
    %v837 = vpop.f32.mrf.mxu0
    %838 = vdwg.mxu0
    %v839 = vrsqrt.pop %v831
    %v840 = vmul.f32 %v831, %v839
    %vm841 = vcmp.eq.f32.partialorder %v831, inf
    %v842 = vsel %vm841, %v831, %v840
    %vm843 = vcmp.eq.f32.partialorder %v831, 0.0
    %v844 = vand.u32 %v831, 2147483648
    %v845 = vsel %vm843, %v844, %v842
    %v846 = vrsqrt.pop %v836
    %v847 = vmul.f32 %v836, %v846
    %vm848 = vcmp.eq.f32.partialorder %v836, inf
    %v849 = vsel %vm848, %v836, %v847
    %vm850 = vcmp.eq.f32.partialorder %v836, 0.0
    %v851 = vand.u32 %v836, 2147483648
    %v852 = vsel %vm850, %v851, %v849
    %v853 = vld [vmem:[#allocation19] sm:$0xff]
    %v854 = vld [vmem:[#allocation19 + $0x8] sm:$0xff]
    %v855 = vmul.f32 %v845, %v853
    %v856 = vmul.f32 %v852, %v854
    %v857 = vadd.f32 %v731, %v855
    %v858 = vadd.f32 %v736, %v856
    %859 = vst [vmem:[#allocation20] sm:$0xff] %v857
    %860 = vst [vmem:[#allocation20 + $0x8] sm:$0xff] %v858
    // Predicated region
    $region110: #{tpu_custom_call.1} parent=1 // pred_check
      _
    $region111: #{tpu_custom_call.1} parent=1 // pred_check_branch
      %862 = sbr.rel (0) target = $region113
    $region112: #{tpu_custom_call.1} parent=1 // pred_region
      %s864 = ssub.s32 256, 256
      %865 = vsyncadd [#allocation4], %s864
      %s866 = sshll.u32 [#allocation20], 4
      %s867 = int_to_ptr.vmem [resolvable:$true] %s866
      %872 = dma.vmem_to_hbm [thread:$0]  %s867, 256, %s16, [#allocation4], 128, 128, 8
    $region113: #{tpu_custom_call.1} parent=1 // pred_fallthru
      _
    // Predicated region
    $region114: #{tpu_custom_call.1} parent=1 // pred_check
      _
    $region115: #{tpu_custom_call.1} parent=1 // pred_check_branch
      %874 = sbr.rel (0) target = $region117
    $region116: #{tpu_custom_call.1} parent=1 // pred_region
      %875 = dma.done [#allocation4], 256
    $region117: #{tpu_custom_call.1} parent=1 // pred_fallthru
      _
    %876 = vsyncpa [#allocation3], 1
    %877 = vsyncpa [#allocation6], 1
    %878 = vsyncpa [#allocation9], 1
    %879 = vsyncpa [#allocation12], 1
    %880 = vsyncpa [#allocation15], 1
    %881 = vsyncpa [#allocation18], 1
    %882 = vsyncpa [#allocation4], 1

</llo_original>
